<compile_context>
chip_gen: v7x
topology: tpu7x:2x2x1
jax: 0.10.0
libtpu: 0.0.40
codegen_flags: <defaults>
</compile_context>

<pallas_src>
import jax
import jax.numpy as jnp
from jax.experimental import pallas as pl
from jax.experimental.pallas import tpu as pltpu


# ----------------------------------------------------------------------------
# Kernel
# ----------------------------------------------------------------------------
def actor_kernel(x_ref, w1_ref, b1_ref, w2_ref, b2_ref, w3_ref, sbb_ref, o_ref):
    """One batch tile: (TB, D) bf16 -> (TB, A) f32.

    sbb_ref packs [b3; action_scale; action_bias] as a (3, A) f32 block.
    """
    cd = w1_ref.dtype                                    # MXU compute dtype (bf16)

    x = x_ref[...]                                       # (TB, D) bf16
    h1 = jnp.dot(x, w1_ref[...], preferred_element_type=jnp.float32)
    h1 = jnp.maximum(h1 + b1_ref[...], 0.0)              # relu(fc1)   (f32)

    h2 = jnp.dot(h1.astype(cd), w2_ref[...], preferred_element_type=jnp.float32)
    h2 = jnp.maximum(h2 + b2_ref[...], 0.0)              # relu(fc2)   (f32)

    mu = jnp.dot(h2.astype(cd), w3_ref[...], preferred_element_type=jnp.float32)
    mu = jnp.tanh(mu + sbb_ref[0:1, :])                  # tanh(fc_mu) (f32)

    o_ref[...] = mu * sbb_ref[1:2, :] + sbb_ref[2:3, :]  # action scale + bias


# ----------------------------------------------------------------------------
# One-time parameter preparation (hoisted out of the hot path — cache this!)
# ----------------------------------------------------------------------------
def prepare_params(params, compute_dtype=jnp.bfloat16):
    f32 = jnp.float32
    return dict(
        w1=params["w1"].astype(compute_dtype),                 # (D, H)
        b1=params["b1"].reshape(1, -1).astype(f32),            # (1, H)
        w2=params["w2"].astype(compute_dtype),                 # (H, H)
        b2=params["b2"].reshape(1, -1).astype(f32),            # (1, H)
        w3=params["w3"].astype(compute_dtype),                 # (H, A)
        sbb=jnp.concatenate(                                   # (3, A): b3, scale, bias
            [params["b3"].reshape(1, -1),
             params["scale"].reshape(1, -1),
             params["bias"].reshape(1, -1)], axis=0).astype(f32),
    )


# ----------------------------------------------------------------------------
# Wrapper
# ----------------------------------------------------------------------------
def _cdiv(a, b):
    return -(-a // b)


def _round_up(n, m):
    return _cdiv(n, m) * m


def actor_forward(x, prepped, *, block_b=1024):
    """x: (B, obs_dim) float32.  prepped: output of prepare_params()."""
    B, D = x.shape
    H = prepped["w1"].shape[1]
    A = prepped["w3"].shape[1]
    cd = prepped["w1"].dtype
    SUB = 8                                    # f32 sublane

    # Adaptive batch tiling: tile tracks ceil(B / num_steps); force >=2 grid
    # steps when the batch allows so both v7x TensorCores get work.
    num_steps = max(_cdiv(B, block_b), min(2, _cdiv(B, SUB)))
    tb = _round_up(_cdiv(B, num_steps), SUB)
    B_pad = num_steps * tb

    # Ship x as bf16; pad only the batch dim (minimal, <1 sublane row per tile).
    if B_pad == B:
        xp = x.astype(cd)
    else:
        xp = jnp.zeros((B_pad, D), cd).at[:B, :].set(x.astype(cd))

    resident = lambda i: (0, 0)                # weights/biases: same block every step
    out = pl.pallas_call(
        actor_kernel,
        out_shape=jax.ShapeDtypeStruct((B_pad, A), jnp.float32),
        grid=(num_steps,),
        in_specs=[
            pl.BlockSpec((tb, D), lambda i: (i, 0)),   # x: pipelined over batch
            pl.BlockSpec((D, H), resident),            # w1
            pl.BlockSpec((1, H), resident),            # b1
            pl.BlockSpec((H, H), resident),            # w2
            pl.BlockSpec((1, H), resident),            # b2
            pl.BlockSpec((H, A), resident),            # w3
            pl.BlockSpec((3, A), resident),            # [b3; action_scale; action_bias]
        ],
        out_specs=pl.BlockSpec((tb, A), lambda i: (i, 0)),
        compiler_params=pltpu.CompilerParams(
            dimension_semantics=("parallel",),         # v7x: 2 TCs split batch
        ),
    )(xp, prepped["w1"], prepped["b1"], prepped["w2"], prepped["b2"],
      prepped["w3"], prepped["sbb"])
    return out[:B] if B_pad != B else out


# ----------------------------------------------------------------------------
# Params / references
# ----------------------------------------------------------------------------
def init_params(key, obs_dim, act_dim, hidden=256,
                action_high=2.0, action_low=-1.0):
    """PyTorch-style uniform(-1/sqrt(fan_in), 1/sqrt(fan_in)) init."""
    def linear(k, fan_in, fan_out):
        kw, kb = jax.random.split(k)
        bound = 1.0 / jnp.sqrt(fan_in)
        w = jax.random.uniform(kw, (fan_in, fan_out), jnp.float32, -bound, bound)
        b = jax.random.uniform(kb, (1, fan_out), jnp.float32, -bound, bound)
        return w, b

    k1, k2, k3 = jax.random.split(key, 3)
    w1, b1 = linear(k1, obs_dim, hidden)
    w2, b2 = linear(k2, hidden, hidden)
    w3, b3 = linear(k3, hidden, act_dim)
    scale = jnp.full((1, act_dim), (action_high - action_low) / 2.0, jnp.float32)
    bias = jnp.full((1, act_dim), (action_high + action_low) / 2.0, jnp.float32)
    return dict(w1=w1, b1=b1, w2=w2, b2=b2, w3=w3, b3=b3, scale=scale, bias=bias)


def actor_reference_f32(x, p):
    h1 = jnp.maximum(x @ p["w1"] + p["b1"], 0.0)
    h2 = jnp.maximum(h1 @ p["w2"] + p["b2"], 0.0)
    mu = jnp.tanh(h2 @ p["w3"] + p["b3"])
    return mu * p["scale"] + p["bias"]


def actor_reference_matched(x, p, compute_dtype=jnp.bfloat16):
    """Same bf16-matmul / f32-accumulate recipe as the kernel."""
    cd = compute_dtype
    h1 = jnp.maximum(
        jnp.dot(x.astype(cd), p["w1"].astype(cd),
                preferred_element_type=jnp.float32) + p["b1"], 0.0)
    h2 = jnp.maximum(
        jnp.dot(h1.astype(cd), p["w2"].astype(cd),
                preferred_element_type=jnp.float32) + p["b2"], 0.0)
    mu = jnp.tanh(
        jnp.dot(h2.astype(cd), p["w3"].astype(cd),
                preferred_element_type=jnp.float32) + p["b3"])
    return mu * p["scale"] + p["bias"]


# ----------------------------------------------------------------------------
# Test
# ----------------------------------------------------------------------------
if __name__ == "__main__":
    key = jax.random.PRNGKey(0)
    k_param, k_x, k_x2 = jax.random.split(key, 3)

    OBS_DIM, ACT_DIM = 16, 4
    params = init_params(k_param, OBS_DIM, ACT_DIM)
    prepped = prepare_params(params)            # one-time cast/pack (cached)

    fwd = jax.jit(actor_forward)

    # Small batch (B=2): single grid step, 8-row batch pad sliced back off.
    x_small = jax.random.normal(k_x, (2, OBS_DIM), jnp.float32)
    out_small = jax.block_until_ready(fwd(x_small, prepped))
    assert out_small.shape == (2, ACT_DIM)
    assert jnp.allclose(out_small, actor_reference_matched(x_small, params),
                        atol=2e-3, rtol=2e-3), "mismatch vs bf16-matched reference"
    assert jnp.allclose(out_small, actor_reference_f32(x_small, params),
                        atol=5e-2, rtol=5e-2), "mismatch vs f32 reference"

    # Larger ragged batch (B=600): 2 grid steps (tb=304), minimal batch padding.
    x_big = jax.random.normal(k_x2, (600, OBS_DIM), jnp.float32)
    out_big = jax.block_until_ready(fwd(x_big, prepped))
    assert out_big.shape == (600, ACT_DIM)
    assert jnp.allclose(out_big, actor_reference_matched(x_big, params),
                        atol=2e-3, rtol=2e-3), "mismatch vs bf16-matched reference"
    assert jnp.allclose(out_big, actor_reference_f32(x_big, params),
                        atol=5e-2, rtol=5e-2), "mismatch vs f32 reference"

    print("KERNEL_OK")
</pallas_src>

<mosaic_0001>
module attributes {stable_mosaic.version = 11 : i64} {
  func.func @actor_kernel(%arg0: i32, %arg1: memref<8x16xbf16, #tpu.memory_space<vmem>>, %arg2: memref<16x256xbf16, #tpu.memory_space<vmem>>, %arg3: memref<1x256xf32, #tpu.memory_space<vmem>>, %arg4: memref<256x256xbf16, #tpu.memory_space<vmem>>, %arg5: memref<1x256xf32, #tpu.memory_space<vmem>>, %arg6: memref<256x4xbf16, #tpu.memory_space<vmem>>, %arg7: memref<3x4xf32, #tpu.memory_space<vmem>>, %arg8: memref<8x4xf32, #tpu.memory_space<vmem>>) attributes {dimension_semantics = [#tpu.dimension_semantics<parallel>], iteration_bounds = array<i64: 1>, scalar_prefetch = 0 : i64, scratch_operands = 0 : i64, tpu.core_type = #tpu.core_type<tc>, window_params = [{transform_indices = @transform_0, window_bounds = array<i64: 8, 16>}, {pipeline_mode = #tpu.pipeline_mode<synchronous>, transform_indices = @transform_1, window_bounds = array<i64: 16, 256>}, {pipeline_mode = #tpu.pipeline_mode<synchronous>, transform_indices = @transform_2, window_bounds = array<i64: 1, 256>}, {pipeline_mode = #tpu.pipeline_mode<synchronous>, transform_indices = @transform_3, window_bounds = array<i64: 256, 256>}, {pipeline_mode = #tpu.pipeline_mode<synchronous>, transform_indices = @transform_4, window_bounds = array<i64: 1, 256>}, {pipeline_mode = #tpu.pipeline_mode<synchronous>, transform_indices = @transform_5, window_bounds = array<i64: 256, 4>}, {pipeline_mode = #tpu.pipeline_mode<synchronous>, transform_indices = @transform_6, window_bounds = array<i64: 3, 4>}, {transform_indices = @transform_7, window_bounds = array<i64: 8, 4>}]} {
    %c0 = arith.constant 0 : index
    %c0_0 = arith.constant 0 : index
    %0 = vector.load %arg1[%c0, %c0_0] : memref<8x16xbf16, #tpu.memory_space<vmem>>, vector<8x16xbf16>
    %c0_1 = arith.constant 0 : index
    %c0_2 = arith.constant 0 : index
    %1 = vector.load %arg2[%c0_1, %c0_2] : memref<16x256xbf16, #tpu.memory_space<vmem>>, vector<16x256xbf16>
    %cst = arith.constant dense<0.000000e+00> : vector<8x256xf32>
    %2 = tpu.matmul %0, %1, %cst {dimension_numbers = #tpu.dot_dimension_numbers<[1], [0], [0], [1], [0, 0, 1, 1], [], []>} : vector<8x16xbf16>, vector<16x256xbf16>, vector<8x256xf32> -> vector<8x256xf32>
    %c0_3 = arith.constant 0 : index
    %c0_4 = arith.constant 0 : index
    %3 = vector.load %arg3[%c0_3, %c0_4] : memref<1x256xf32, #tpu.memory_space<vmem>>, vector<1x256xf32>
    %4 = vector.broadcast %3 : vector<1x256xf32> to vector<8x256xf32>
    %5 = arith.addf %2, %4 : vector<8x256xf32>
    %cst_5 = arith.constant 0.000000e+00 : f32
    %6 = vector.broadcast %cst_5 : f32 to vector<8x256xf32>
    %7 = arith.maximumf %5, %6 : vector<8x256xf32>
    %8 = arith.truncf %7 : vector<8x256xf32> to vector<8x256xbf16>
    %c0_6 = arith.constant 0 : index
    %c0_7 = arith.constant 0 : index
    %9 = vector.load %arg4[%c0_6, %c0_7] : memref<256x256xbf16, #tpu.memory_space<vmem>>, vector<256x256xbf16>
    %cst_8 = arith.constant dense<0.000000e+00> : vector<8x256xf32>
    %10 = tpu.matmul %8, %9, %cst_8 {dimension_numbers = #tpu.dot_dimension_numbers<[1], [0], [0], [1], [0, 0, 1, 1], [], []>} : vector<8x256xbf16>, vector<256x256xbf16>, vector<8x256xf32> -> vector<8x256xf32>
    %c0_9 = arith.constant 0 : index
    %c0_10 = arith.constant 0 : index
    %11 = vector.load %arg5[%c0_9, %c0_10] : memref<1x256xf32, #tpu.memory_space<vmem>>, vector<1x256xf32>
    %12 = vector.broadcast %11 : vector<1x256xf32> to vector<8x256xf32>
    %13 = arith.addf %10, %12 : vector<8x256xf32>
    %cst_11 = arith.constant 0.000000e+00 : f32
    %14 = vector.broadcast %cst_11 : f32 to vector<8x256xf32>
    %15 = arith.maximumf %13, %14 : vector<8x256xf32>
    %16 = arith.truncf %15 : vector<8x256xf32> to vector<8x256xbf16>
    %c0_12 = arith.constant 0 : index
    %c0_13 = arith.constant 0 : index
    %17 = vector.load %arg6[%c0_12, %c0_13] : memref<256x4xbf16, #tpu.memory_space<vmem>>, vector<256x4xbf16>
    %cst_14 = arith.constant dense<0.000000e+00> : vector<8x4xf32>
    %18 = tpu.matmul %16, %17, %cst_14 {dimension_numbers = #tpu.dot_dimension_numbers<[1], [0], [0], [1], [0, 0, 1, 1], [], []>} : vector<8x256xbf16>, vector<256x4xbf16>, vector<8x4xf32> -> vector<8x4xf32>
    %c0_15 = arith.constant 0 : index
    %c0_16 = arith.constant 0 : index
    %19 = vector.load %arg7[%c0_15, %c0_16] : memref<3x4xf32, #tpu.memory_space<vmem>>, vector<1x4xf32>
    %20 = vector.broadcast %19 : vector<1x4xf32> to vector<8x4xf32>
    %21 = arith.addf %18, %20 : vector<8x4xf32>
    %22 = math.tanh %21 : vector<8x4xf32>
    %c1 = arith.constant 1 : index
    %c0_17 = arith.constant 0 : index
    %23 = vector.load %arg7[%c1, %c0_17] : memref<3x4xf32, #tpu.memory_space<vmem>>, vector<1x4xf32>
    %24 = vector.broadcast %23 : vector<1x4xf32> to vector<8x4xf32>
    %25 = arith.mulf %22, %24 : vector<8x4xf32>
    %c2 = arith.constant 2 : index
    %c0_18 = arith.constant 0 : index
    %26 = vector.load %arg7[%c2, %c0_18] : memref<3x4xf32, #tpu.memory_space<vmem>>, vector<1x4xf32>
    %27 = vector.broadcast %26 : vector<1x4xf32> to vector<8x4xf32>
    %28 = arith.addf %25, %27 : vector<8x4xf32>
    %c0_19 = arith.constant 0 : index
    %c0_20 = arith.constant 0 : index
    %29 = vector.load %arg8[%c0_19, %c0_20] : memref<8x4xf32, #tpu.memory_space<vmem>>, vector<8x4xf32>
    tpu.vector_store %arg8[%c0_19, %c0_20], %28 {strides = array<i32>} : memref<8x4xf32, #tpu.memory_space<vmem>>, vector<8x4xf32>,
    return
  }
  func.func @transform_0(%arg0: i32) -> (i32, i32) {
    %c0_i32 = arith.constant 0 : i32
    %c0_i32_0 = arith.constant 0 : i32
    return %arg0, %c0_i32 : i32, i32
  }
  func.func @transform_1(%arg0: i32) -> (i32, i32) {
    %c0_i32 = arith.constant 0 : i32
    %c0_i32_0 = arith.constant 0 : i32
    %c0_i32_1 = arith.constant 0 : i32
    return %c0_i32, %c0_i32_0 : i32, i32
  }
  func.func @transform_2(%arg0: i32) -> (i32, i32) {
    %c0_i32 = arith.constant 0 : i32
    %c0_i32_0 = arith.constant 0 : i32
    %c0_i32_1 = arith.constant 0 : i32
    return %c0_i32, %c0_i32_0 : i32, i32
  }
  func.func @transform_3(%arg0: i32) -> (i32, i32) {
    %c0_i32 = arith.constant 0 : i32
    %c0_i32_0 = arith.constant 0 : i32
    %c0_i32_1 = arith.constant 0 : i32
    return %c0_i32, %c0_i32_0 : i32, i32
  }
  func.func @transform_4(%arg0: i32) -> (i32, i32) {
    %c0_i32 = arith.constant 0 : i32
    %c0_i32_0 = arith.constant 0 : i32
    %c0_i32_1 = arith.constant 0 : i32
    return %c0_i32, %c0_i32_0 : i32, i32
  }
  func.func @transform_5(%arg0: i32) -> (i32, i32) {
    %c0_i32 = arith.constant 0 : i32
    %c0_i32_0 = arith.constant 0 : i32
    %c0_i32_1 = arith.constant 0 : i32
    return %c0_i32, %c0_i32_0 : i32, i32
  }
  func.func @transform_6(%arg0: i32) -> (i32, i32) {
    %c0_i32 = arith.constant 0 : i32
    %c0_i32_0 = arith.constant 0 : i32
    %c0_i32_1 = arith.constant 0 : i32
    return %c0_i32, %c0_i32_0 : i32, i32
  }
  func.func @transform_7(%arg0: i32) -> (i32, i32) {
    %c0_i32 = arith.constant 0 : i32
    %c0_i32_0 = arith.constant 0 : i32
    return %arg0, %c0_i32 : i32, i32
  }
}

</mosaic_0001>

<llo_original>
// kernel: actor_forward.1
$region0: #{actor_forward.1}
  #allocation0 [shape = 'u32[]', space=smem, size = 0x4, offset = 0x4, fixed_abs, tag = 'smem constant byte address 0x4 - core index']
  #allocation1 [shape = 'u32[144,128]{1,0:T(1,128)}', space=vmem, size = 0x12000, scoped, tag = 'internal scratch']
  %s0 = inlined_call_operand.vmem [shape: bf16[8,16], index: 0, kind: input, shape index: {}]
  %s1 = inlined_call_operand.vmem [shape: bf16[16,256], index: 1, kind: input, shape index: {}]
  %s2 = inlined_call_operand.vmem [shape: f32[1,256], index: 2, kind: input, shape index: {}]
  %s3 = inlined_call_operand.hbm [shape: bf16[256,256], index: 3, kind: input, shape index: {}]
  %s4 = inlined_call_operand.vmem [shape: f32[1,256], index: 4, kind: input, shape index: {}]
  %s5 = inlined_call_operand.vmem [shape: bf16[256,4], index: 5, kind: input, shape index: {}]
  %s6 = inlined_call_operand.vmem [shape: f32[3,4], index: 6, kind: input, shape index: {}]
  %s7 = inlined_call_operand.vmem [shape: f32[8,4], index: 7, kind: output, shape index: {}]
  %s8 = sld [smem:[#allocation0]]
  $region42: #{actor_forward.1} parent=0
    _
  %s10 = ssub.s32 1, %s8
  %s11 = scalar_select 0, %s10, %s8
  $region1: #{actor_forward.1} parent=0
    #allocation2 [shape = 'u8[131072]{0}', space=vmem, size = 0x20000, scoped, tag = 'input window, operand 3, single buffered']
    #allocation3 [shape = 's32[1]{0}', space=sflag, size = 0x4, scoped, tag = 'scoped memory for actor_forward.1']
    %12 = vsyncpa [#allocation3], 0
    // Predicated region
    $region2: #{actor_forward.1} parent=1 // pred_check
      _
    $region3: #{actor_forward.1} parent=1 // pred_check_branch
      %14 = sbr.rel (0) target = $region5
    $region4: #{actor_forward.1} parent=1 // pred_region
      _
    $region5: #{actor_forward.1} parent=1 // pred_fallthru
      _
    // Predicated region
    $region6: #{actor_forward.1} parent=1 // pred_check
      _
    $region7: #{actor_forward.1} parent=1 // pred_check_branch
      %16 = sbr.rel (0) target = $region9
    $region8: #{actor_forward.1} parent=1 // pred_region
      _
    $region9: #{actor_forward.1} parent=1 // pred_fallthru
      _
    // Predicated region
    $region10: #{actor_forward.1} parent=1 // pred_check
      _
    $region11: #{actor_forward.1} parent=1 // pred_check_branch
      %18 = sbr.rel (0) target = $region13
    $region12: #{actor_forward.1} parent=1 // pred_region
      _
    $region13: #{actor_forward.1} parent=1 // pred_fallthru
      _
    // Predicated region
    $region14: #{actor_forward.1} parent=1 // pred_check
      _
    $region15: #{actor_forward.1} parent=1 // pred_check_branch
      %20 = sbr.rel (0) target = $region17
    $region16: #{actor_forward.1} parent=1 // pred_region
      %s22 = ssub.s32 4096, 4096
      %23 = vsyncadd [#allocation3], %s22
      %s24 = sshll.u32 [#allocation2], 4
      %s25 = int_to_ptr.vmem [resolvable:$true] %s24
      %30 = dma.hbm_to_vmem [thread:$0]  %s3, 4096, %s25, [#allocation3], 128, 128, 8
    $region17: #{actor_forward.1} parent=1 // pred_fallthru
      _
    // Predicated region
    $region18: #{actor_forward.1} parent=1 // pred_check
      _
    $region19: #{actor_forward.1} parent=1 // pred_check_branch
      %32 = sbr.rel (0) target = $region21
    $region20: #{actor_forward.1} parent=1 // pred_region
      _
    $region21: #{actor_forward.1} parent=1 // pred_fallthru
      _
    // Predicated region
    $region22: #{actor_forward.1} parent=1 // pred_check
      _
    $region23: #{actor_forward.1} parent=1 // pred_check_branch
      %34 = sbr.rel (0) target = $region25
    $region24: #{actor_forward.1} parent=1 // pred_region
      _
    $region25: #{actor_forward.1} parent=1 // pred_fallthru
      _
    // Predicated region
    $region26: #{actor_forward.1} parent=1 // pred_check
      _
    $region27: #{actor_forward.1} parent=1 // pred_check_branch
      %36 = sbr.rel (0) target = $region29
    $region28: #{actor_forward.1} parent=1 // pred_region
      _
    $region29: #{actor_forward.1} parent=1 // pred_fallthru
      _
    // Predicated region
    $region30: #{actor_forward.1} parent=1 // pred_check
      _
    $region31: #{actor_forward.1} parent=1 // pred_check_branch
      %38 = sbr.rel (0) target = $region33
    $region32: #{actor_forward.1} parent=1 // pred_region
      %39 = dma.done [#allocation3], 4096
    $region33: #{actor_forward.1} parent=1 // pred_fallthru
      _
    %v41 = vld [vmem:[%s0] sm:$0xf]
    %v42 = vld [vmem:[%s1] sm:$0xff]
    %v43 = vld [vmem:[%s1 + $0x8] sm:$0xff]
    %v44 = vld [vmem:[%s2] sm:$0x3]
    %v46 = vlaneseq
    %v47 = vshrl.u32 %v46, 7
    %v48 = vsub.s32 0, %v47
    %v49 = vrot.slane %v44, %v48
    %v50 = vlaneseq
    %v51 = vshrl.u32 %v50, 7
    %v52 = vsub.s32 1, %v51
    %v53 = vrot.slane %v44, %v52
    %v58 = vunpack.c.l.b16 %v42
    %v59 = vunpack.c.h.b16 %v42
    %v60 = vunpack.c.l.b16 %v43
    %v61 = vunpack.c.h.b16 %v43
    %v62 = vpack.c.b16 %v60, %v58
    %v63 = vpack.c.b16 %v61, %v59
    %vm66 = vcmask 130048
    %v68 = vsel %vm66, %v41, 0
    %70 = vmatprep.subr.bf16.mxu0 %v63
    %71 = vmatpush1.bf16.msra.mxu0 %v62
    %72 = vmatprep.subr.bf16.mxu0 0
    %73 = vmatpush1.bf16.msra.mxu0 0
    %74 = vmatprep.subr.bf16.mxu0 0
    %75 = vmatpush1.bf16.msra.mxu0 0
    %76 = vmatprep.subr.bf16.mxu0 0
    %77 = vmatpush1.bf16.msra.mxu0 0
    %78 = vmatprep.subr.bf16.mxu0 0
    %79 = vmatpush1.bf16.msra.mxu0 0
    %80 = vmatprep.subr.bf16.mxu0 0
    %81 = vmatpush1.bf16.msra.mxu0 0
    %82 = vmatprep.subr.bf16.mxu0 0
    %83 = vmatpush1.bf16.msra.mxu0 0
    %84 = vmatprep.subr.bf16.mxu0 0
    %85 = vmatpush1.bf16.msra.mxu0 0
    %86 = vmatprep.subr.bf16.mxu0 0
    %87 = vmatpush1.bf16.msra.mxu0 0
    %88 = vmatprep.subr.bf16.mxu0 0
    %89 = vmatpush1.bf16.msra.mxu0 0
    %90 = vmatprep.subr.bf16.mxu0 0
    %91 = vmatpush1.bf16.msra.mxu0 0
    %92 = vmatprep.subr.bf16.mxu0 0
    %93 = vmatpush1.bf16.msra.mxu0 0
    %94 = vmatprep.subr.bf16.mxu0 0
    %95 = vmatpush1.bf16.msra.mxu0 0
    %96 = vmatprep.subr.bf16.mxu0 0
    %97 = vmatpush1.bf16.msra.mxu0 0
    %98 = vmatprep.subr.bf16.mxu0 0
    %99 = vmatpush1.bf16.msra.mxu0 0
    %100 = vmatprep.subr.bf16.mxu0 0
    %101 = vmatpush1.bf16.msra.mxu0 0
    %102 = vmatprep.mubr.bf16.mxu0 0
    %103 = vmatmul.mubr.bf16.gmra.mrb[0].mxu0 %v68
    %v104 = vpop.f32.mrb[0].mxu0
    %v105 = vadd.f32 %v49, %v104
    %v106 = vpop.f32.mrb[0].mxu0
    %v107 = vadd.f32 %v53, %v106
    %v108 = vpop.f32.mrb[0].mxu0
    %v109 = vpop.f32.mrb[0].mxu0
    %110 = vdwg.mxu0
    %v111 = vmax.f32 %v105, 0.0
    %v112 = vmax.f32 %v107, 0.0
    %v113 = vpack.c.bf16 %v111, %v111
    %v114 = vpack.c.bf16 %v112, %v112
    %v115 = vld [vmem:[#allocation2] sm:$0xff]
    %v116 = vld [vmem:[#allocation2 + $0x8] sm:$0xff]
    %v117 = vld [vmem:[#allocation2 + $0x10] sm:$0xff]
    %v118 = vld [vmem:[#allocation2 + $0x18] sm:$0xff]
    %v119 = vld [vmem:[#allocation2 + $0x20] sm:$0xff]
    %v120 = vld [vmem:[#allocation2 + $0x28] sm:$0xff]
    %v121 = vld [vmem:[#allocation2 + $0x30] sm:$0xff]
    %v122 = vld [vmem:[#allocation2 + $0x38] sm:$0xff]
    %v123 = vld [vmem:[#allocation2 + $0x40] sm:$0xff]
    %v124 = vld [vmem:[#allocation2 + $0x48] sm:$0xff]
    %v125 = vld [vmem:[#allocation2 + $0x50] sm:$0xff]
    %v126 = vld [vmem:[#allocation2 + $0x58] sm:$0xff]
    %v127 = vld [vmem:[#allocation2 + $0x60] sm:$0xff]
    %v128 = vld [vmem:[#allocation2 + $0x68] sm:$0xff]
    %v129 = vld [vmem:[#allocation2 + $0x70] sm:$0xff]
    %v130 = vld [vmem:[#allocation2 + $0x78] sm:$0xff]
    %v131 = vld [vmem:[#allocation2 + $0x80] sm:$0xff]
    %v132 = vld [vmem:[#allocation2 + $0x88] sm:$0xff]
    %v133 = vld [vmem:[#allocation2 + $0x90] sm:$0xff]
    %v134 = vld [vmem:[#allocation2 + $0x98] sm:$0xff]
    %v135 = vld [vmem:[#allocation2 + $0xa0] sm:$0xff]
    %v136 = vld [vmem:[#allocation2 + $0xa8] sm:$0xff]
    %v137 = vld [vmem:[#allocation2 + $0xb0] sm:$0xff]
    %v138 = vld [vmem:[#allocation2 + $0xb8] sm:$0xff]
    %v139 = vld [vmem:[#allocation2 + $0xc0] sm:$0xff]
    %v140 = vld [vmem:[#allocation2 + $0xc8] sm:$0xff]
    %v141 = vld [vmem:[#allocation2 + $0xd0] sm:$0xff]
    %v142 = vld [vmem:[#allocation2 + $0xd8] sm:$0xff]
    %v143 = vld [vmem:[#allocation2 + $0xe0] sm:$0xff]
    %v144 = vld [vmem:[#allocation2 + $0xe8] sm:$0xff]
    %v145 = vld [vmem:[#allocation2 + $0xf0] sm:$0xff]
    %v146 = vld [vmem:[#allocation2 + $0xf8] sm:$0xff]
    %v147 = vld [vmem:[%s4] sm:$0x3]
    %v149 = vlaneseq
    %v150 = vshrl.u32 %v149, 7
    %v151 = vsub.s32 0, %v150
    %v152 = vrot.slane %v147, %v151
    %v153 = vlaneseq
    %v154 = vshrl.u32 %v153, 7
    %v155 = vsub.s32 1, %v154
    %v156 = vrot.slane %v147, %v155
    %v191 = vunpack.c.l.b16 %v115
    %v192 = vunpack.c.h.b16 %v115
    %v193 = vunpack.c.l.b16 %v116
    %v194 = vunpack.c.h.b16 %v116
    %v195 = vunpack.c.l.b16 %v117
    %v196 = vunpack.c.h.b16 %v117
    %v197 = vunpack.c.l.b16 %v118
    %v198 = vunpack.c.h.b16 %v118
    %v199 = vunpack.c.l.b16 %v119
    %v200 = vunpack.c.h.b16 %v119
    %v201 = vunpack.c.l.b16 %v120
    %v202 = vunpack.c.h.b16 %v120
    %v203 = vunpack.c.l.b16 %v121
    %v204 = vunpack.c.h.b16 %v121
    %v205 = vunpack.c.l.b16 %v122
    %v206 = vunpack.c.h.b16 %v122
    %v207 = vunpack.c.l.b16 %v123
    %v208 = vunpack.c.h.b16 %v123
    %v209 = vunpack.c.l.b16 %v124
    %v210 = vunpack.c.h.b16 %v124
    %v211 = vunpack.c.l.b16 %v125
    %v212 = vunpack.c.h.b16 %v125
    %v213 = vunpack.c.l.b16 %v126
    %v214 = vunpack.c.h.b16 %v126
    %v215 = vunpack.c.l.b16 %v127
    %v216 = vunpack.c.h.b16 %v127
    %v217 = vunpack.c.l.b16 %v128
    %v218 = vunpack.c.h.b16 %v128
    %v219 = vunpack.c.l.b16 %v129
    %v220 = vunpack.c.h.b16 %v129
    %v221 = vunpack.c.l.b16 %v130
    %v222 = vunpack.c.h.b16 %v130
    %v223 = vunpack.c.l.b16 %v131
    %v224 = vunpack.c.h.b16 %v131
    %v225 = vunpack.c.l.b16 %v132
    %v226 = vunpack.c.h.b16 %v132
    %v227 = vunpack.c.l.b16 %v133
    %v228 = vunpack.c.h.b16 %v133
    %v229 = vunpack.c.l.b16 %v134
    %v230 = vunpack.c.h.b16 %v134
    %v231 = vunpack.c.l.b16 %v135
    %v232 = vunpack.c.h.b16 %v135
    %v233 = vunpack.c.l.b16 %v136
    %v234 = vunpack.c.h.b16 %v136
    %v235 = vunpack.c.l.b16 %v137
    %v236 = vunpack.c.h.b16 %v137
    %v237 = vunpack.c.l.b16 %v138
    %v238 = vunpack.c.h.b16 %v138
    %v239 = vunpack.c.l.b16 %v139
    %v240 = vunpack.c.h.b16 %v139
    %v241 = vunpack.c.l.b16 %v140
    %v242 = vunpack.c.h.b16 %v140
    %v243 = vunpack.c.l.b16 %v141
    %v244 = vunpack.c.h.b16 %v141
    %v245 = vunpack.c.l.b16 %v142
    %v246 = vunpack.c.h.b16 %v142
    %v247 = vunpack.c.l.b16 %v143
    %v248 = vunpack.c.h.b16 %v143
    %v249 = vunpack.c.l.b16 %v144
    %v250 = vunpack.c.h.b16 %v144
    %v251 = vunpack.c.l.b16 %v145
    %v252 = vunpack.c.h.b16 %v145
    %v253 = vunpack.c.l.b16 %v146
    %v254 = vunpack.c.h.b16 %v146
    %v255 = vpack.c.b16 %v193, %v191
    %v256 = vpack.c.b16 %v194, %v192
    %v257 = vpack.c.b16 %v197, %v195
    %v258 = vpack.c.b16 %v198, %v196
    %v259 = vpack.c.b16 %v201, %v199
    %v260 = vpack.c.b16 %v202, %v200
    %v261 = vpack.c.b16 %v205, %v203
    %v262 = vpack.c.b16 %v206, %v204
    %v263 = vpack.c.b16 %v209, %v207
    %v264 = vpack.c.b16 %v210, %v208
    %v265 = vpack.c.b16 %v213, %v211
    %v266 = vpack.c.b16 %v214, %v212
    %v267 = vpack.c.b16 %v217, %v215
    %v268 = vpack.c.b16 %v218, %v216
    %v269 = vpack.c.b16 %v221, %v219
    %v270 = vpack.c.b16 %v222, %v220
    %v271 = vpack.c.b16 %v225, %v223
    %v272 = vpack.c.b16 %v226, %v224
    %v273 = vpack.c.b16 %v229, %v227
    %v274 = vpack.c.b16 %v230, %v228
    %v275 = vpack.c.b16 %v233, %v231
    %v276 = vpack.c.b16 %v234, %v232
    %v277 = vpack.c.b16 %v237, %v235
    %v278 = vpack.c.b16 %v238, %v236
    %v279 = vpack.c.b16 %v241, %v239
    %v280 = vpack.c.b16 %v242, %v240
    %v281 = vpack.c.b16 %v245, %v243
    %v282 = vpack.c.b16 %v246, %v244
    %v283 = vpack.c.b16 %v249, %v247
    %v284 = vpack.c.b16 %v250, %v248
    %v285 = vpack.c.b16 %v253, %v251
    %v286 = vpack.c.b16 %v254, %v252
    %319 = vmatprep.subr.bf16.mxu0 %v256
    %320 = vmatpush1.bf16.msra.mxu0 %v255
    %321 = vmatprep.subr.bf16.mxu0 %v258
    %322 = vmatpush1.bf16.msra.mxu0 %v257
    %323 = vmatprep.subr.bf16.mxu0 %v260
    %324 = vmatpush1.bf16.msra.mxu0 %v259
    %325 = vmatprep.subr.bf16.mxu0 %v262
    %326 = vmatpush1.bf16.msra.mxu0 %v261
    %327 = vmatprep.subr.bf16.mxu0 %v264
    %328 = vmatpush1.bf16.msra.mxu0 %v263
    %329 = vmatprep.subr.bf16.mxu0 %v266
    %330 = vmatpush1.bf16.msra.mxu0 %v265
    %331 = vmatprep.subr.bf16.mxu0 %v268
    %332 = vmatpush1.bf16.msra.mxu0 %v267
    %333 = vmatprep.subr.bf16.mxu0 %v270
    %334 = vmatpush1.bf16.msra.mxu0 %v269
    %335 = vmatprep.subr.bf16.mxu0 %v272
    %336 = vmatpush1.bf16.msra.mxu0 %v271
    %337 = vmatprep.subr.bf16.mxu0 %v274
    %338 = vmatpush1.bf16.msra.mxu0 %v273
    %339 = vmatprep.subr.bf16.mxu0 %v276
    %340 = vmatpush1.bf16.msra.mxu0 %v275
    %341 = vmatprep.subr.bf16.mxu0 %v278
    %342 = vmatpush1.bf16.msra.mxu0 %v277
    %343 = vmatprep.subr.bf16.mxu0 %v280
    %344 = vmatpush1.bf16.msra.mxu0 %v279
    %345 = vmatprep.subr.bf16.mxu0 %v282
    %346 = vmatpush1.bf16.msra.mxu0 %v281
    %347 = vmatprep.subr.bf16.mxu0 %v284
    %348 = vmatpush1.bf16.msra.mxu0 %v283
    %349 = vmatprep.subr.bf16.mxu0 %v286
    %350 = vmatpush1.bf16.msra.mxu0 %v285
    %351 = vmatprep.mubr.bf16.mxu0 %v114
    %352 = vmatmul.mubr.bf16.gmra.mrb[0].mxu0 %v113
    %v353 = vpop.f32.mrb[0].mxu0
    %v354 = vadd.f32 %v152, %v353
    %v355 = vpop.f32.mrb[0].mxu0
    %v356 = vadd.f32 %v156, %v355
    %v357 = vpop.f32.mrb[0].mxu0
    %v358 = vpop.f32.mrb[0].mxu0
    %359 = vdwg.mxu0
    %v360 = vmax.f32 %v354, 0.0
    %v361 = vmax.f32 %v356, 0.0
    %v362 = vpack.c.bf16 %v360, %v360
    %v363 = vpack.c.bf16 %v361, %v361
    %v364 = vld [vmem:[%s5] sm:$0xf]
    %v365 = vld [vmem:[%s5 + $0x4] sm:$0xf]
    %v366 = vld [vmem:[%s5 + $0x8] sm:$0xf]
    %v367 = vld [vmem:[%s5 + $0xc] sm:$0xf]
    %v368 = vld [vmem:[%s5 + $0x10] sm:$0xf]
    %v369 = vld [vmem:[%s5 + $0x14] sm:$0xf]
    %v370 = vld [vmem:[%s5 + $0x18] sm:$0xf]
    %v371 = vld [vmem:[%s5 + $0x1c] sm:$0xf]
    %v372 = vld [vmem:[%s5 + $0x20] sm:$0xf]
    %v373 = vld [vmem:[%s5 + $0x24] sm:$0xf]
    %v374 = vld [vmem:[%s5 + $0x28] sm:$0xf]
    %v375 = vld [vmem:[%s5 + $0x2c] sm:$0xf]
    %v376 = vld [vmem:[%s5 + $0x30] sm:$0xf]
    %v377 = vld [vmem:[%s5 + $0x34] sm:$0xf]
    %v378 = vld [vmem:[%s5 + $0x38] sm:$0xf]
    %v379 = vld [vmem:[%s5 + $0x3c] sm:$0xf]
    %v380 = vld [vmem:[%s5 + $0x40] sm:$0xf]
    %v381 = vld [vmem:[%s5 + $0x44] sm:$0xf]
    %v382 = vld [vmem:[%s5 + $0x48] sm:$0xf]
    %v383 = vld [vmem:[%s5 + $0x4c] sm:$0xf]
    %v384 = vld [vmem:[%s5 + $0x50] sm:$0xf]
    %v385 = vld [vmem:[%s5 + $0x54] sm:$0xf]
    %v386 = vld [vmem:[%s5 + $0x58] sm:$0xf]
    %v387 = vld [vmem:[%s5 + $0x5c] sm:$0xf]
    %v388 = vld [vmem:[%s5 + $0x60] sm:$0xf]
    %v389 = vld [vmem:[%s5 + $0x64] sm:$0xf]
    %v390 = vld [vmem:[%s5 + $0x68] sm:$0xf]
    %v391 = vld [vmem:[%s5 + $0x6c] sm:$0xf]
    %v392 = vld [vmem:[%s5 + $0x70] sm:$0xf]
    %v393 = vld [vmem:[%s5 + $0x74] sm:$0xf]
    %v394 = vld [vmem:[%s5 + $0x78] sm:$0xf]
    %v395 = vld [vmem:[%s5 + $0x7c] sm:$0xf]
    %v396 = vld [vmem:[%s6] sm:$0x1]
    %v397 = vlaneseq
    %v398 = vshrl.u32 %v397, 7
    %v399 = vsub.s32 0, %v398
    %v400 = vrot.slane %v396, %v399
    %v433 = vunpack.c.l.b16 %v364
    %v434 = vunpack.c.l.b16 %v365
    %v435 = vunpack.c.l.b16 %v366
    %v436 = vunpack.c.l.b16 %v367
    %v437 = vunpack.c.l.b16 %v368
    %v438 = vunpack.c.l.b16 %v369
    %v439 = vunpack.c.l.b16 %v370
    %v440 = vunpack.c.l.b16 %v371
    %v441 = vunpack.c.l.b16 %v372
    %v442 = vunpack.c.l.b16 %v373
    %v443 = vunpack.c.l.b16 %v374
    %v444 = vunpack.c.l.b16 %v375
    %v445 = vunpack.c.l.b16 %v376
    %v446 = vunpack.c.l.b16 %v377
    %v447 = vunpack.c.l.b16 %v378
    %v448 = vunpack.c.l.b16 %v379
    %v449 = vunpack.c.l.b16 %v380
    %v450 = vunpack.c.l.b16 %v381
    %v451 = vunpack.c.l.b16 %v382
    %v452 = vunpack.c.l.b16 %v383
    %v453 = vunpack.c.l.b16 %v384
    %v454 = vunpack.c.l.b16 %v385
    %v455 = vunpack.c.l.b16 %v386
    %v456 = vunpack.c.l.b16 %v387
    %v457 = vunpack.c.l.b16 %v388
    %v458 = vunpack.c.l.b16 %v389
    %v459 = vunpack.c.l.b16 %v390
    %v460 = vunpack.c.l.b16 %v391
    %v461 = vunpack.c.l.b16 %v392
    %v462 = vunpack.c.l.b16 %v393
    %v463 = vunpack.c.l.b16 %v394
    %v464 = vunpack.c.l.b16 %v395
    %v465 = vpack.c.b16 %v434, %v433
    %v466 = vpack.c.b16 %v436, %v435
    %v467 = vpack.c.b16 %v438, %v437
    %v468 = vpack.c.b16 %v440, %v439
    %v469 = vpack.c.b16 %v442, %v441
    %v470 = vpack.c.b16 %v444, %v443
    %v471 = vpack.c.b16 %v446, %v445
    %v472 = vpack.c.b16 %v448, %v447
    %v473 = vpack.c.b16 %v450, %v449
    %v474 = vpack.c.b16 %v452, %v451
    %v475 = vpack.c.b16 %v454, %v453
    %v476 = vpack.c.b16 %v456, %v455
    %v477 = vpack.c.b16 %v458, %v457
    %v478 = vpack.c.b16 %v460, %v459
    %v479 = vpack.c.b16 %v462, %v461
    %v480 = vpack.c.b16 %v464, %v463
    %497 = vmatprep.subr.bf16.mxu0 0
    %498 = vmatpush1.bf16.msra.mxu0 %v465
    %499 = vmatprep.subr.bf16.mxu0 0
    %500 = vmatpush1.bf16.msra.mxu0 %v466
    %501 = vmatprep.subr.bf16.mxu0 0
    %502 = vmatpush1.bf16.msra.mxu0 %v467
    %503 = vmatprep.subr.bf16.mxu0 0
    %504 = vmatpush1.bf16.msra.mxu0 %v468
    %505 = vmatprep.subr.bf16.mxu0 0
    %506 = vmatpush1.bf16.msra.mxu0 %v469
    %507 = vmatprep.subr.bf16.mxu0 0
    %508 = vmatpush1.bf16.msra.mxu0 %v470
    %509 = vmatprep.subr.bf16.mxu0 0
    %510 = vmatpush1.bf16.msra.mxu0 %v471
    %511 = vmatprep.subr.bf16.mxu0 0
    %512 = vmatpush1.bf16.msra.mxu0 %v472
    %513 = vmatprep.subr.bf16.mxu0 0
    %514 = vmatpush1.bf16.msra.mxu0 %v473
    %515 = vmatprep.subr.bf16.mxu0 0
    %516 = vmatpush1.bf16.msra.mxu0 %v474
    %517 = vmatprep.subr.bf16.mxu0 0
    %518 = vmatpush1.bf16.msra.mxu0 %v475
    %519 = vmatprep.subr.bf16.mxu0 0
    %520 = vmatpush1.bf16.msra.mxu0 %v476
    %521 = vmatprep.subr.bf16.mxu0 0
    %522 = vmatpush1.bf16.msra.mxu0 %v477
    %523 = vmatprep.subr.bf16.mxu0 0
    %524 = vmatpush1.bf16.msra.mxu0 %v478
    %525 = vmatprep.subr.bf16.mxu0 0
    %526 = vmatpush1.bf16.msra.mxu0 %v479
    %527 = vmatprep.subr.bf16.mxu0 0
    %528 = vmatpush1.bf16.msra.mxu0 %v480
    %529 = vmatprep.mubr.bf16.mxu0 %v363
    %530 = vmatmul.mubr.bf16.gmra.mrb[0].mxu0 %v362
    %v531 = vpop.f32.mrb[0].mxu0
    %v532 = vadd.f32 %v400, %v531
    %v533 = vpop.f32.mrb[0].mxu0
    %v534 = vpop.f32.mrb[0].mxu0
    %v535 = vpop.f32.mrb[0].mxu0
    %536 = vdwg.mxu0
    %v537 = vtanh.pop %v532
    %v538 = vld [vmem:[%s6 + $0x1] sm:$0x1]
    %v539 = vlaneseq
    %v540 = vshrl.u32 %v539, 7
    %v541 = vsub.s32 0, %v540
    %v542 = vrot.slane %v538, %v541
    %v543 = vmul.f32 %v537, %v542
    %v544 = vld [vmem:[%s6 + $0x2] sm:$0x1]
    %v545 = vlaneseq
    %v546 = vshrl.u32 %v545, 7
    %v547 = vsub.s32 0, %v546
    %v548 = vrot.slane %v544, %v547
    %v549 = vadd.f32 %v543, %v548
    %vm550 = vcmask 31744
    %551 = vst.msk [vmem:[%s7] sm:$0xff] %vm550, %v549
    // Predicated region
    $region34: #{actor_forward.1} parent=1 // pred_check
      _
    $region35: #{actor_forward.1} parent=1 // pred_check_branch
      %553 = sbr.rel (0) target = $region37
    $region36: #{actor_forward.1} parent=1 // pred_region
      _
    $region37: #{actor_forward.1} parent=1 // pred_fallthru
      _
    // Predicated region
    $region38: #{actor_forward.1} parent=1 // pred_check
      _
    $region39: #{actor_forward.1} parent=1 // pred_check_branch
      %555 = sbr.rel (0) target = $region41
    $region40: #{actor_forward.1} parent=1 // pred_region
      _
    $region41: #{actor_forward.1} parent=1 // pred_fallthru
      _
    %556 = vsyncpa [#allocation3], 1

</llo_original>
